<compile_context>
chip_gen: v5e
topology: v5e:2x2
jax: 0.10.0
libtpu: 0.0.40
codegen_flags: <defaults>
</compile_context>

<pallas_src>
import math
import numpy as np
import jax
import jax.numpy as jnp
from jax.experimental import pallas as pl
from jax.experimental.pallas import tpu as pltpu

# ---------------- small-shape config (consistent with the module) ----------------
IMG_SIZE   = 32          # module default 224; small for the demo
PATCH      = 16
IN_CHANS   = 3
AUDIO_H, AUDIO_W = 128, 192   # module hardcodes audio grid = (128//patch, 192//patch)
EMBED_DIM  = 64          # module default 768
DEPTH      = 2           # module default 12
NUM_HEADS  = 4
MLP_RATIO  = 4.0
LN_EPS     = 1e-5        # nn.LayerNorm default
INIT_STD   = 0.02
B          = 2

GRID_SIZE  = IMG_SIZE // PATCH
N_VIDEO    = GRID_SIZE * GRID_SIZE          # 4
A_GH, A_GW = AUDIO_H // PATCH, AUDIO_W // PATCH
N_AUDIO    = A_GH * A_GW                    # 96 (matches audio_pos_embed)
N_TOKENS   = N_VIDEO + N_AUDIO              # 100
N_PAD      = 128                            # tokens padded to a full lane width
HEAD_DIM   = EMBED_DIM // NUM_HEADS         # 16
HIDDEN     = int(EMBED_DIM * MLP_RATIO)     # 256
VP_DIM     = IN_CHANS * PATCH * PATCH       # 768
AP_DIM     = 1 * PATCH * PATCH              # 256
NEG_INF    = -1e30


# ---------------- sin-cos positional embeddings (fixed, non-trainable) ----------------
def _sincos_1d(embed_dim, pos):
    omega = np.arange(embed_dim // 2, dtype=np.float64)
    omega /= embed_dim / 2.0
    omega = 1.0 / (10000.0 ** omega)
    out = np.einsum("m,d->md", pos.reshape(-1).astype(np.float64), omega)
    return np.concatenate([np.sin(out), np.cos(out)], axis=1)


def get_2d_sincos_pos_embed(embed_dim, grid_size):
    gh = np.arange(grid_size, dtype=np.float64)
    gw = np.arange(grid_size, dtype=np.float64)
    gww, ghh = np.meshgrid(gw, gh)           # row-major over (h, w)
    emb_h = _sincos_1d(embed_dim // 2, ghh)
    emb_w = _sincos_1d(embed_dim // 2, gww)
    return np.concatenate([emb_h, emb_w], axis=1)   # (grid*grid, D)


def get_2d_sincos_pos_embed_xy(embed_dim, grid_h, grid_w):
    gh = np.arange(grid_h, dtype=np.float64)
    gw = np.arange(grid_w, dtype=np.float64)
    gww, ghh = np.meshgrid(gw, gh)
    emb_h = _sincos_1d(embed_dim // 2, ghh)
    emb_w = _sincos_1d(embed_dim // 2, gww)
    return np.concatenate([emb_h, emb_w], axis=1)   # (grid_h*grid_w, D)


# ---------------- Pallas kernel: fused patch embed + pos embed + concat + pad ----------------
def _embed_kernel(vp_ref, ap_ref, vw_ref, vb_ref, aw_ref, ab_ref,
                  vpos_ref, apos_ref, o_ref):
    v = (jnp.dot(vp_ref[0].astype(jnp.bfloat16), vw_ref[...],
                 preferred_element_type=jnp.float32)
         + vb_ref[...] + vpos_ref[...])                       # (N_VIDEO, D)
    a = (jnp.dot(ap_ref[0].astype(jnp.bfloat16), aw_ref[...],
                 preferred_element_type=jnp.float32)
         + ab_ref[...] + apos_ref[...])                       # (N_AUDIO, D)
    # direct slice stores into the resident output tile (no concat temporary)
    o_ref[0, :N_VIDEO, :] = v
    o_ref[0, N_VIDEO:N_TOKENS, :] = a
    o_ref[0, N_TOKENS:, :] = jnp.zeros((N_PAD - N_TOKENS, EMBED_DIM), jnp.float32)


def pallas_patch_embed(vpatches, apatches, p):
    Bv = vpatches.shape[0]
    return pl.pallas_call(
        _embed_kernel,
        grid=(Bv,),
        in_specs=[
            pl.BlockSpec((1, N_VIDEO, VP_DIM), lambda b: (b, 0, 0)),
            pl.BlockSpec((1, N_AUDIO, AP_DIM), lambda b: (b, 0, 0)),
            pl.BlockSpec((VP_DIM, EMBED_DIM), lambda b: (0, 0)),
            pl.BlockSpec((1, EMBED_DIM), lambda b: (0, 0)),
            pl.BlockSpec((AP_DIM, EMBED_DIM), lambda b: (0, 0)),
            pl.BlockSpec((1, EMBED_DIM), lambda b: (0, 0)),
            pl.BlockSpec((N_VIDEO, EMBED_DIM), lambda b: (0, 0)),
            pl.BlockSpec((N_AUDIO, EMBED_DIM), lambda b: (0, 0)),
        ],
        out_specs=pl.BlockSpec((1, N_PAD, EMBED_DIM), lambda b: (b, 0, 0)),
        out_shape=jax.ShapeDtypeStruct((Bv, N_PAD, EMBED_DIM), jnp.float32),
        compiler_params=pltpu.CompilerParams(dimension_semantics=("parallel",)),
    )(vpatches, apatches,
      p["video_pe_w"], p["video_pe_b"],
      p["audio_pe_w"], p["audio_pe_b"],
      p["video_pos_embed"], p["audio_pos_embed"])


# ---------------- Pallas kernel: all transformer blocks + final LN, fused ----------------
def _blocks_kernel(x_ref,
                   ln1g_ref, ln1b_ref, qkvw_ref, qkvb_ref, projw_ref, projb_ref,
                   ln2g_ref, ln2b_ref, fc1w_ref, fc1b_ref, fc2w_ref, fc2b_ref,
                   ng_ref, nb_ref,
                   o_ref, ctx_sc):
    l = pl.program_id(1)
    last = pl.num_programs(1) - 1
    D = EMBED_DIM

    # The output block (index constant across the depth axis) is the VMEM-resident
    # cross-layer accumulator. Seed it with the embedded tokens at the first layer.
    @pl.when(l == 0)
    def _():
        o_ref[0] = x_ref[0]

    x = o_ref[0]                                              # (N_PAD, D) f32

    # --- LayerNorm 1 ---
    mu = jnp.mean(x, axis=-1, keepdims=True)
    var = jnp.mean((x - mu) ** 2, axis=-1, keepdims=True)
    xn = (x - mu) * jax.lax.rsqrt(var + LN_EPS) * ln1g_ref[l] + ln1b_ref[l]

    # --- multi-head self attention ---
    # fused QKV matmul; cast to bf16 ONCE, per-head q/k/v are bf16 slices
    qkv = (jnp.dot(xn.astype(jnp.bfloat16), qkvw_ref[l],
                   preferred_element_type=jnp.float32)
           + qkvb_ref[l]).astype(jnp.bfloat16)                # (N_PAD, 3D) bf16
    scale = 1.0 / math.sqrt(HEAD_DIM)

    # key-padding mask, broadcast once per layer (hoisted out of the head loop)
    col = jax.lax.broadcasted_iota(jnp.int32, (1, N_PAD), 1)
    key_mask = pl.broadcast_to(
        jnp.where(col < N_TOKENS, 0.0, NEG_INF).astype(jnp.float32),
        (N_PAD, N_PAD))

    for h in range(NUM_HEADS):
        qh = qkv[:, h * HEAD_DIM:(h + 1) * HEAD_DIM]
        kh = qkv[:, D + h * HEAD_DIM:D + (h + 1) * HEAD_DIM]
        vh = qkv[:, 2 * D + h * HEAD_DIM:2 * D + (h + 1) * HEAD_DIM]
        s = jax.lax.dot_general(
            qh, kh, dimension_numbers=(((1,), (1,)), ((), ())),
            preferred_element_type=jnp.float32) * scale + key_mask      # (N_PAD, N_PAD)
        s = s - jnp.max(s, axis=-1, keepdims=True)
        p = jnp.exp(s)
        p = p * pl.reciprocal(jnp.sum(p, axis=-1, keepdims=True), approx=True)
        ctx = jnp.dot(p.astype(jnp.bfloat16), vh,
                      preferred_element_type=jnp.float32)               # (N_PAD, hd)
        # stash this head's context at its static 16-lane offset (bf16 scratch)
        ctx_sc[:, h * HEAD_DIM:(h + 1) * HEAD_DIM] = ctx.astype(jnp.bfloat16)

    # single output-projection matmul over all heads (K = D, one MXU push)
    attn_out = (jnp.dot(ctx_sc[...], projw_ref[l],
                        preferred_element_type=jnp.float32) + projb_ref[l])
    x = x + attn_out

    # --- LayerNorm 2 + MLP ---
    mu2 = jnp.mean(x, axis=-1, keepdims=True)
    var2 = jnp.mean((x - mu2) ** 2, axis=-1, keepdims=True)
    xn2 = (x - mu2) * jax.lax.rsqrt(var2 + LN_EPS) * ln2g_ref[l] + ln2b_ref[l]
    hdn = (jnp.dot(xn2.astype(jnp.bfloat16), fc1w_ref[l],
                   preferred_element_type=jnp.float32) + fc1b_ref[l])
    # tanh GELU (EUP) per perf feedback; exact-erf nn.GELU differs by ~1e-3 (< bf16 noise)
    hdn = jax.nn.gelu(hdn, approximate=True)
    hdn = (jnp.dot(hdn.astype(jnp.bfloat16), fc2w_ref[l],
                   preferred_element_type=jnp.float32) + fc2b_ref[l])
    x = x + hdn

    # write back the residual stream (non-last layers) ...
    @pl.when(l != last)
    def _():
        o_ref[0] = x

    # ... or fuse the final LayerNorm into the last layer's epilogue (reuse in-register x)
    @pl.when(l == last)
    def _():
        muf = jnp.mean(x, axis=-1, keepdims=True)
        varf = jnp.mean((x - muf) ** 2, axis=-1, keepdims=True)
        o_ref[0] = (x - muf) * jax.lax.rsqrt(varf + LN_EPS) * ng_ref[...] + nb_ref[...]


def pallas_blocks(tokens, bp, norm_g, norm_b):
    Bv = tokens.shape[0]
    D, H3, HID = EMBED_DIM, 3 * EMBED_DIM, HIDDEN

    # Per-layer stacked params: the block spans ALL layers (index_map constant), so the
    # whole weight stack is DMA'd once and stays VMEM-resident; layer l is indexed in-kernel.
    def wspec(shape):
        return pl.BlockSpec((DEPTH,) + shape, lambda b, l: (0, 0, 0))

    def gspec(shape):   # global (layer-independent) param
        return pl.BlockSpec(shape, lambda b, l: (0, 0))

    tok_spec = pl.BlockSpec((1, N_PAD, D), lambda b, l: (b, 0, 0))

    return pl.pallas_call(
        _blocks_kernel,
        grid=(Bv, DEPTH),
        in_specs=[
            tok_spec,
            wspec((1, D)), wspec((1, D)),          # ln1 gamma, beta
            wspec((D, H3)), wspec((1, H3)),        # qkv
            wspec((D, D)), wspec((1, D)),          # proj
            wspec((1, D)), wspec((1, D)),          # ln2
            wspec((D, HID)), wspec((1, HID)),      # fc1
            wspec((HID, D)), wspec((1, D)),        # fc2
            gspec((1, D)), gspec((1, D)),          # final norm gamma, beta
        ],
        out_specs=tok_spec,
        out_shape=jax.ShapeDtypeStruct((Bv, N_PAD, D), jnp.float32),
        scratch_shapes=[pltpu.VMEM((N_PAD, D), jnp.bfloat16)],   # per-head ctx staging
        compiler_params=pltpu.CompilerParams(
            dimension_semantics=("parallel", "arbitrary")),
    )(tokens,
      bp["ln1_g"], bp["ln1_b"], bp["qkv_w"], bp["qkv_b"],
      bp["proj_w"], bp["proj_b"], bp["ln2_g"], bp["ln2_b"],
      bp["fc1_w"], bp["fc1_b"], bp["fc2_w"], bp["fc2_b"],
      norm_g, norm_b)


# ---------------- parameter init (deterministic, mirrors __init__) ----------------
def _trunc_normal(key, shape, std=INIT_STD):
    return std * jax.random.truncated_normal(key, -2.0, 2.0, shape, dtype=jnp.float32)


def init_params(key):
    n_block_keys = DEPTH * 4
    keys = jax.random.split(key, 2 + n_block_keys)
    params = {}

    # patch-embed "conv" weights, stored (C*p*p, D) = Conv2d weight (D,C,p,p) flattened & T.
    # Matmul weights are kept in bf16 (f32 accumulation in-kernel); biases/LN stay f32.
    params["video_pe_w"] = _trunc_normal(keys[0], (VP_DIM, EMBED_DIM)).astype(jnp.bfloat16)
    params["video_pe_b"] = jnp.zeros((1, EMBED_DIM), jnp.float32)
    params["audio_pe_w"] = _trunc_normal(keys[1], (AP_DIM, EMBED_DIM)).astype(jnp.bfloat16)
    params["audio_pe_b"] = jnp.zeros((1, EMBED_DIM), jnp.float32)

    # fixed sin-cos positional embeddings (requires_grad=False in the module)
    params["video_pos_embed"] = jnp.asarray(
        get_2d_sincos_pos_embed(EMBED_DIM, GRID_SIZE), jnp.float32)       # (N_VIDEO, D)
    params["audio_pos_embed"] = jnp.asarray(
        get_2d_sincos_pos_embed_xy(EMBED_DIM, A_GH, A_GW), jnp.float32)   # (96, D)

    qkv_w, proj_w, fc1_w, fc2_w = [], [], [], []
    for i in range(DEPTH):
        k0, k1, k2, k3 = keys[2 + 4 * i: 2 + 4 * (i + 1)]
        rescale = 1.0 / math.sqrt(2.0 * (i + 1))    # _rescale_blocks
        qkv_w.append(_trunc_normal(k0, (EMBED_DIM, 3 * EMBED_DIM)))
        proj_w.append(_trunc_normal(k1, (EMBED_DIM, EMBED_DIM)) * rescale)
        fc1_w.append(_trunc_normal(k2, (EMBED_DIM, HIDDEN)))
        fc2_w.append(_trunc_normal(k3, (HIDDEN, EMBED_DIM)) * rescale)

    # per-layer params stacked along a leading depth axis (indexed in-kernel)
    params["blocks"] = {
        "ln1_g": jnp.ones((DEPTH, 1, EMBED_DIM), jnp.float32),
        "ln1_b": jnp.zeros((DEPTH, 1, EMBED_DIM), jnp.float32),
        "qkv_w": jnp.stack(qkv_w).astype(jnp.bfloat16),
        "qkv_b": jnp.zeros((DEPTH, 1, 3 * EMBED_DIM), jnp.float32),
        "proj_w": jnp.stack(proj_w).astype(jnp.bfloat16),
        "proj_b": jnp.zeros((DEPTH, 1, EMBED_DIM), jnp.float32),
        "ln2_g": jnp.ones((DEPTH, 1, EMBED_DIM), jnp.float32),
        "ln2_b": jnp.zeros((DEPTH, 1, EMBED_DIM), jnp.float32),
        "fc1_w": jnp.stack(fc1_w).astype(jnp.bfloat16),
        "fc1_b": jnp.zeros((DEPTH, 1, HIDDEN), jnp.float32),
        "fc2_w": jnp.stack(fc2_w).astype(jnp.bfloat16),
        "fc2_b": jnp.zeros((DEPTH, 1, EMBED_DIM), jnp.float32),
    }
    params["norm_g"] = jnp.ones((1, EMBED_DIM), jnp.float32)
    params["norm_b"] = jnp.zeros((1, EMBED_DIM), jnp.float32)
    return params


# ---------------- forward (glue in JAX, compute in Pallas) ----------------
def _extract_patches(x, patch):
    # NCHW -> (B, num_patches, C*p*p), patch order row-major over (h, w),
    # channel-major within a patch (matches Conv2d weight (D, C, ph, pw) flatten).
    Bv, C, H, W = x.shape
    gh, gw = H // patch, W // patch
    x = x.reshape(Bv, C, gh, patch, gw, patch)
    x = x.transpose(0, 2, 4, 1, 3, 5)
    return x.reshape(Bv, gh * gw, C * patch * patch)


def audiovision_transformer_forward(x, y, params, masks=None):
    # TODO(synk): masks path (apply_masks / attention mask argument) not implemented; masks must be None.
    # TODO(synk): interpolate_pos_encoding is a no-op here since input sizes match the configured
    #             img_size / audio size (trilinear/bicubic interpolation not implemented).
    assert masks is None
    vpatches = _extract_patches(x, PATCH)            # (B, N_VIDEO, C*p*p)
    apatches = _extract_patches(y, PATCH)            # (B, N_AUDIO, p*p)

    # fused patch-embed projection + pos-embed add + video/audio concat + pad to 128 tokens
    tokens = pallas_patch_embed(vpatches, apatches, params)          # (B, N_PAD, D)

    # fused DEPTH transformer blocks + final LayerNorm, activations resident in VMEM
    tokens = pallas_blocks(tokens, params["blocks"],
                           params["norm_g"], params["norm_b"])       # (B, N_PAD, D)

    return tokens[:, :N_TOKENS, :]                   # drop padded rows


if __name__ == "__main__":
    key = jax.random.PRNGKey(0)
    kx, ky, kp = jax.random.split(key, 3)

    x = jax.random.normal(kx, (B, IN_CHANS, IMG_SIZE, IMG_SIZE), dtype=jnp.float32)   # video/image
    y = jax.random.normal(ky, (B, 1, AUDIO_H, AUDIO_W), dtype=jnp.float32)            # audio spectrogram

    params = init_params(kp)

    out = audiovision_transformer_forward(x, y, params)
    out = jax.block_until_ready(out)
    assert out.shape == (B, N_TOKENS, EMBED_DIM), out.shape
    assert jnp.all(jnp.isfinite(out))
    print("KERNEL_OK")
</pallas_src>

<mosaic_0001>
module attributes {stable_mosaic.version = 11 : i64} {
  func.func @_embed_kernel(%arg0: i32, %arg1: memref<1x4x768xf32, #tpu.memory_space<vmem>>, %arg2: memref<1x96x256xf32, #tpu.memory_space<vmem>>, %arg3: memref<768x64xbf16, #tpu.memory_space<vmem>>, %arg4: memref<1x64xf32, #tpu.memory_space<vmem>>, %arg5: memref<256x64xbf16, #tpu.memory_space<vmem>>, %arg6: memref<1x64xf32, #tpu.memory_space<vmem>>, %arg7: memref<4x64xf32, #tpu.memory_space<vmem>>, %arg8: memref<96x64xf32, #tpu.memory_space<vmem>>, %arg9: memref<1x128x64xf32, #tpu.memory_space<vmem>>) attributes {dimension_semantics = [#tpu.dimension_semantics<parallel>], iteration_bounds = array<i64: 2>, scalar_prefetch = 0 : i64, scratch_operands = 0 : i64, tpu.core_type = #tpu.core_type<tc>, window_params = [{transform_indices = @transform_0, window_bounds = array<i64: 1, 4, 768>}, {transform_indices = @transform_1, window_bounds = array<i64: 1, 96, 256>}, {pipeline_mode = #tpu.pipeline_mode<synchronous>, transform_indices = @transform_2, window_bounds = array<i64: 768, 64>}, {pipeline_mode = #tpu.pipeline_mode<synchronous>, transform_indices = @transform_3, window_bounds = array<i64: 1, 64>}, {pipeline_mode = #tpu.pipeline_mode<synchronous>, transform_indices = @transform_4, window_bounds = array<i64: 256, 64>}, {pipeline_mode = #tpu.pipeline_mode<synchronous>, transform_indices = @transform_5, window_bounds = array<i64: 1, 64>}, {pipeline_mode = #tpu.pipeline_mode<synchronous>, transform_indices = @transform_6, window_bounds = array<i64: 4, 64>}, {pipeline_mode = #tpu.pipeline_mode<synchronous>, transform_indices = @transform_7, window_bounds = array<i64: 96, 64>}, {transform_indices = @transform_8, window_bounds = array<i64: 1, 128, 64>}]} {
    %c0 = arith.constant 0 : index
    %c0_0 = arith.constant 0 : index
    %c0_1 = arith.constant 0 : index
    %0 = vector.load %arg1[%c0, %c0_0, %c0_1] : memref<1x4x768xf32, #tpu.memory_space<vmem>>, vector<1x4x768xf32>
    %1 = vector.shape_cast %0 : vector<1x4x768xf32> to vector<4x768xf32>
    %2 = arith.truncf %1 : vector<4x768xf32> to vector<4x768xbf16>
    %c0_2 = arith.constant 0 : index
    %c0_3 = arith.constant 0 : index
    %3 = vector.load %arg3[%c0_2, %c0_3] : memref<768x64xbf16, #tpu.memory_space<vmem>>, vector<768x64xbf16>
    %cst = arith.constant dense<0.000000e+00> : vector<4x64xf32>
    %4 = tpu.matmul %2, %3, %cst {dimension_numbers = #tpu.dot_dimension_numbers<[1], [0], [0], [1], [0, 0, 1, 1], [], []>} : vector<4x768xbf16>, vector<768x64xbf16>, vector<4x64xf32> -> vector<4x64xf32>
    %c0_4 = arith.constant 0 : index
    %c0_5 = arith.constant 0 : index
    %5 = vector.load %arg4[%c0_4, %c0_5] : memref<1x64xf32, #tpu.memory_space<vmem>>, vector<1x64xf32>
    %6 = vector.broadcast %5 : vector<1x64xf32> to vector<4x64xf32>
    %7 = arith.addf %4, %6 : vector<4x64xf32>
    %c0_6 = arith.constant 0 : index
    %c0_7 = arith.constant 0 : index
    %8 = vector.load %arg7[%c0_6, %c0_7] : memref<4x64xf32, #tpu.memory_space<vmem>>, vector<4x64xf32>
    %9 = arith.addf %7, %8 : vector<4x64xf32>
    %c0_8 = arith.constant 0 : index
    %c0_9 = arith.constant 0 : index
    %c0_10 = arith.constant 0 : index
    %10 = vector.load %arg2[%c0_8, %c0_9, %c0_10] : memref<1x96x256xf32, #tpu.memory_space<vmem>>, vector<1x96x256xf32>
    %11 = vector.shape_cast %10 : vector<1x96x256xf32> to vector<96x256xf32>
    %12 = arith.truncf %11 : vector<96x256xf32> to vector<96x256xbf16>
    %c0_11 = arith.constant 0 : index
    %c0_12 = arith.constant 0 : index
    %13 = vector.load %arg5[%c0_11, %c0_12] : memref<256x64xbf16, #tpu.memory_space<vmem>>, vector<256x64xbf16>
    %cst_13 = arith.constant dense<0.000000e+00> : vector<96x64xf32>
    %14 = tpu.matmul %12, %13, %cst_13 {dimension_numbers = #tpu.dot_dimension_numbers<[1], [0], [0], [1], [0, 0, 1, 1], [], []>} : vector<96x256xbf16>, vector<256x64xbf16>, vector<96x64xf32> -> vector<96x64xf32>
    %c0_14 = arith.constant 0 : index
    %c0_15 = arith.constant 0 : index
    %15 = vector.load %arg6[%c0_14, %c0_15] : memref<1x64xf32, #tpu.memory_space<vmem>>, vector<1x64xf32>
    %16 = vector.broadcast %15 : vector<1x64xf32> to vector<96x64xf32>
    %17 = arith.addf %14, %16 : vector<96x64xf32>
    %c0_16 = arith.constant 0 : index
    %c0_17 = arith.constant 0 : index
    %18 = vector.load %arg8[%c0_16, %c0_17] : memref<96x64xf32, #tpu.memory_space<vmem>>, vector<96x64xf32>
    %19 = arith.addf %17, %18 : vector<96x64xf32>
    %c0_18 = arith.constant 0 : index
    %c0_19 = arith.constant 0 : index
    %c0_20 = arith.constant 0 : index
    %20 = vector.load %arg9[%c0_18, %c0_19, %c0_20] : memref<1x128x64xf32, #tpu.memory_space<vmem>>, vector<1x4x64xf32>
    %21 = vector.shape_cast %20 : vector<1x4x64xf32> to vector<4x64xf32>
    %22 = vector.shape_cast %9 : vector<4x64xf32> to vector<1x4x64xf32>
    tpu.vector_store %arg9[%c0_18, %c0_19, %c0_20], %22 {strides = array<i32>} : memref<1x128x64xf32, #tpu.memory_space<vmem>>, vector<1x4x64xf32>,
    %c0_21 = arith.constant 0 : index
    %c4 = arith.constant 4 : index
    %c0_22 = arith.constant 0 : index
    %23 = vector.load %arg9[%c0_21, %c4, %c0_22] : memref<1x128x64xf32, #tpu.memory_space<vmem>>, vector<1x96x64xf32>
    %24 = vector.shape_cast %23 : vector<1x96x64xf32> to vector<96x64xf32>
    %25 = vector.shape_cast %19 : vector<96x64xf32> to vector<1x96x64xf32>
    tpu.vector_store %arg9[%c0_21, %c4, %c0_22], %25 {strides = array<i32>} : memref<1x128x64xf32, #tpu.memory_space<vmem>>, vector<1x96x64xf32>,
    %cst_23 = arith.constant 0.000000e+00 : f32
    %26 = vector.broadcast %cst_23 : f32 to vector<28x64xf32>
    %c0_24 = arith.constant 0 : index
    %c100 = arith.constant 100 : index
    %c0_25 = arith.constant 0 : index
    %27 = vector.load %arg9[%c0_24, %c100, %c0_25] : memref<1x128x64xf32, #tpu.memory_space<vmem>>, vector<1x28x64xf32>
    %28 = vector.shape_cast %27 : vector<1x28x64xf32> to vector<28x64xf32>
    %29 = vector.shape_cast %26 : vector<28x64xf32> to vector<1x28x64xf32>
    tpu.vector_store %arg9[%c0_24, %c100, %c0_25], %29 {strides = array<i32>} : memref<1x128x64xf32, #tpu.memory_space<vmem>>, vector<1x28x64xf32>,
    return
  }
  func.func @transform_0(%arg0: i32) -> (i32, i32, i32) {
    %c0_i32 = arith.constant 0 : i32
    %c0_i32_0 = arith.constant 0 : i32
    %c0_i32_1 = arith.constant 0 : i32
    return %arg0, %c0_i32, %c0_i32_0 : i32, i32, i32
  }
  func.func @transform_1(%arg0: i32) -> (i32, i32, i32) {
    %c0_i32 = arith.constant 0 : i32
    %c0_i32_0 = arith.constant 0 : i32
    %c0_i32_1 = arith.constant 0 : i32
    return %arg0, %c0_i32, %c0_i32_0 : i32, i32, i32
  }
  func.func @transform_2(%arg0: i32) -> (i32, i32) {
    %c0_i32 = arith.constant 0 : i32
    %c0_i32_0 = arith.constant 0 : i32
    %c0_i32_1 = arith.constant 0 : i32
    return %c0_i32, %c0_i32_0 : i32, i32
  }
  func.func @transform_3(%arg0: i32) -> (i32, i32) {
    %c0_i32 = arith.constant 0 : i32
    %c0_i32_0 = arith.constant 0 : i32
    %c0_i32_1 = arith.constant 0 : i32
    return %c0_i32, %c0_i32_0 : i32, i32
  }
  func.func @transform_4(%arg0: i32) -> (i32, i32) {
    %c0_i32 = arith.constant 0 : i32
    %c0_i32_0 = arith.constant 0 : i32
    %c0_i32_1 = arith.constant 0 : i32
    return %c0_i32, %c0_i32_0 : i32, i32
  }
  func.func @transform_5(%arg0: i32) -> (i32, i32) {
    %c0_i32 = arith.constant 0 : i32
    %c0_i32_0 = arith.constant 0 : i32
    %c0_i32_1 = arith.constant 0 : i32
    return %c0_i32, %c0_i32_0 : i32, i32
  }
  func.func @transform_6(%arg0: i32) -> (i32, i32) {
    %c0_i32 = arith.constant 0 : i32
    %c0_i32_0 = arith.constant 0 : i32
    %c0_i32_1 = arith.constant 0 : i32
    return %c0_i32, %c0_i32_0 : i32, i32
  }
  func.func @transform_7(%arg0: i32) -> (i32, i32) {
    %c0_i32 = arith.constant 0 : i32
    %c0_i32_0 = arith.constant 0 : i32
    %c0_i32_1 = arith.constant 0 : i32
    return %c0_i32, %c0_i32_0 : i32, i32
  }
  func.func @transform_8(%arg0: i32) -> (i32, i32, i32) {
    %c0_i32 = arith.constant 0 : i32
    %c0_i32_0 = arith.constant 0 : i32
    %c0_i32_1 = arith.constant 0 : i32
    return %arg0, %c0_i32, %c0_i32_0 : i32, i32, i32
  }
}

</mosaic_0001>

<llo_original>
// kernel: tpu_custom_call.1
$region0: #{tpu_custom_call.1}
  #allocation0 [shape = 'u32[]', space=smem, size = 0x4, offset = 0x4, fixed_abs, tag = 'smem constant byte address 0x4 - core index']
  #allocation1 [shape = 'u32[72,128]{1,0:T(1,128)}', space=vmem, size = 0x9000, scoped, tag = 'internal scratch']
  %s0 = inlined_call_operand.vmem [shape: f32[2,4,768], index: 0, kind: input, shape index: {}]
  %s1 = inlined_call_operand.vmem [shape: f32[2,96,256], index: 1, kind: input, shape index: {}]
  %s2 = inlined_call_operand.vmem [shape: bf16[768,64], index: 2, kind: input, shape index: {}]
  %s3 = inlined_call_operand.vmem [shape: f32[1,64], index: 3, kind: input, shape index: {}]
  %s4 = inlined_call_operand.vmem [shape: bf16[256,64], index: 4, kind: input, shape index: {}]
  %s5 = inlined_call_operand.vmem [shape: f32[1,64], index: 5, kind: input, shape index: {}]
  %s6 = inlined_call_operand.vmem [shape: f32[4,64], index: 6, kind: input, shape index: {}]
  %s7 = inlined_call_operand.vmem [shape: f32[96,64], index: 7, kind: input, shape index: {}]
  %s8 = inlined_call_operand.vmem [shape: f32[2,128,64], index: 8, kind: output, shape index: {}]
  %s9 = sld [smem:[#allocation0]]
  $region65: #{tpu_custom_call.1} parent=0
    _
  %s11 = ssub.s32 1, %s9
  %s12 = scalar_select 0, %s11, %s9
  loop: start=0, step=1, limit=4
  $region2: #{tpu_custom_call.1} parent=0 // loop_pre_header
    _
  $region3: #{tpu_custom_call.1} parent=0 // loop_header
    %s14 = sphi 0, %s18
    %p15 = scmp.ge.s32.totalorder %s14, 4
    %s24 = sphi 0, %s26
    %s27 = sphi 0, %s24
    %s28 = sphi 0, %s27
    %s44 = sphi 0, %s28
    %s50 = sphi 0, %s52
    %s53 = sphi 0, %s50
    %s54 = sphi 0, %s53
    %s70 = sphi 0, %s54
    %s74 = sphi 0, %s74
    %s76 = sphi 0, %s74
    %s77 = sphi 0, %s76
    %s91 = sphi 0, %s77
    %s95 = sphi 0, %s95
    %s97 = sphi 0, %s95
    %s98 = sphi 0, %s97
    %s112 = sphi 0, %s98
    %s116 = sphi 0, %s116
    %s118 = sphi 0, %s116
    %s119 = sphi 0, %s118
    %s133 = sphi 0, %s119
    %s137 = sphi 0, %s137
    %s139 = sphi 0, %s137
    %s140 = sphi 0, %s139
    %s154 = sphi 0, %s140
    %s158 = sphi 0, %s158
    %s160 = sphi 0, %s158
    %s161 = sphi 0, %s160
    %s175 = sphi 0, %s161
    %s179 = sphi 0, %s179
    %s181 = sphi 0, %s179
    %s182 = sphi 0, %s181
    %s196 = sphi 0, %s182
    %s202 = sphi 0, %s204
    %s205 = sphi 0, %s202
    %s206 = sphi 0, %s205
    %s222 = sphi 0, %s206
  $region4: #{tpu_custom_call.1} parent=0 // loop_header_branch
    %17 = sbr.rel (%p15) target = $region8
  $region5: #{tpu_custom_call.1} parent=0 // loop_body
    %s19 = ssub.s32 %s14, 1
    %s20 = ssub.s32 %s14, 2
    %s21 = sadd.s32 %s14, 1
    %s22 = ssub.s32 %s14, %s21
    %p23 = scmp.eq.s32.totalorder %s22, 0
    %s25 = sadd.s32 %s24, 1
    %s26 = scalar_select %p23, %s24, %s25
    %p29 = pneg %p23
    %p30 = scmp.eq.s32.totalorder %s14, 1
    %p31 = por %p29, %p30
    %p32 = scmp.ne.s32.totalorder %s24, %s27
    %p33 = scmp.eq.s32.totalorder %s14, 0
    %p34 = por %p32, %p33
    %p35 = scmp.ne.s32.totalorder %s24, %s27
    %p36 = scmp.eq.s32.totalorder %s19, 1
    %p37 = por %p35, %p36
    %p38 = scmp.ne.s32.totalorder %s27, %s28
    %p39 = scmp.eq.s32.totalorder %s19, 0
    %p40 = por %p38, %p39
    %p41 = scmp.ne.s32.totalorder %s27, %s28
    %p42 = scmp.eq.s32.totalorder %s20, 1
    %p43 = por %p41, %p42
    %p45 = scmp.ne.s32.totalorder %s28, %s44
    %p46 = scmp.eq.s32.totalorder %s20, 0
    %p47 = por %p45, %p46
    %s48 = ssub.s32 %s14, %s21
    %p49 = scmp.eq.s32.totalorder %s48, 0
    %s51 = sadd.s32 %s50, 1
    %s52 = scalar_select %p49, %s50, %s51
    %p55 = pneg %p49
    %p56 = scmp.eq.s32.totalorder %s14, 1
    %p57 = por %p55, %p56
    %p58 = scmp.ne.s32.totalorder %s50, %s53
    %p59 = scmp.eq.s32.totalorder %s14, 0
    %p60 = por %p58, %p59
    %p61 = scmp.ne.s32.totalorder %s50, %s53
    %p62 = scmp.eq.s32.totalorder %s19, 1
    %p63 = por %p61, %p62
    %p64 = scmp.ne.s32.totalorder %s53, %s54
    %p65 = scmp.eq.s32.totalorder %s19, 0
    %p66 = por %p64, %p65
    %p67 = scmp.ne.s32.totalorder %s53, %s54
    %p68 = scmp.eq.s32.totalorder %s20, 1
    %p69 = por %p67, %p68
    %p71 = scmp.ne.s32.totalorder %s54, %s70
    %p72 = scmp.eq.s32.totalorder %s20, 0
    %p73 = por %p71, %p72
    %s75 = sadd.s32 %s74, 1
    %p78 = scmp.eq.s32.totalorder %s14, 1
    %p79 = scmp.ne.s32.totalorder %s74, %s76
    %p80 = scmp.eq.s32.totalorder %s14, 0
    %p81 = por %p79, %p80
    %p82 = scmp.ne.s32.totalorder %s74, %s76
    %p83 = scmp.eq.s32.totalorder %s19, 1
    %p84 = por %p82, %p83
    %p85 = scmp.ne.s32.totalorder %s76, %s77
    %p86 = scmp.eq.s32.totalorder %s19, 0
    %p87 = por %p85, %p86
    %p88 = scmp.ne.s32.totalorder %s76, %s77
    %p89 = scmp.eq.s32.totalorder %s20, 1
    %p90 = por %p88, %p89
    %p92 = scmp.ne.s32.totalorder %s77, %s91
    %p93 = scmp.eq.s32.totalorder %s20, 0
    %p94 = por %p92, %p93
    %s96 = sadd.s32 %s95, 1
    %p99 = scmp.eq.s32.totalorder %s14, 1
    %p100 = scmp.ne.s32.totalorder %s95, %s97
    %p101 = scmp.eq.s32.totalorder %s14, 0
    %p102 = por %p100, %p101
    %p103 = scmp.ne.s32.totalorder %s95, %s97
    %p104 = scmp.eq.s32.totalorder %s19, 1
    %p105 = por %p103, %p104
    %p106 = scmp.ne.s32.totalorder %s97, %s98
    %p107 = scmp.eq.s32.totalorder %s19, 0
    %p108 = por %p106, %p107
    %p109 = scmp.ne.s32.totalorder %s97, %s98
    %p110 = scmp.eq.s32.totalorder %s20, 1
    %p111 = por %p109, %p110
    %p113 = scmp.ne.s32.totalorder %s98, %s112
    %p114 = scmp.eq.s32.totalorder %s20, 0
    %p115 = por %p113, %p114
    %s117 = sadd.s32 %s116, 1
    %p120 = scmp.eq.s32.totalorder %s14, 1
    %p121 = scmp.ne.s32.totalorder %s116, %s118
    %p122 = scmp.eq.s32.totalorder %s14, 0
    %p123 = por %p121, %p122
    %p124 = scmp.ne.s32.totalorder %s116, %s118
    %p125 = scmp.eq.s32.totalorder %s19, 1
    %p126 = por %p124, %p125
    %p127 = scmp.ne.s32.totalorder %s118, %s119
    %p128 = scmp.eq.s32.totalorder %s19, 0
    %p129 = por %p127, %p128
    %p130 = scmp.ne.s32.totalorder %s118, %s119
    %p131 = scmp.eq.s32.totalorder %s20, 1
    %p132 = por %p130, %p131
    %p134 = scmp.ne.s32.totalorder %s119, %s133
    %p135 = scmp.eq.s32.totalorder %s20, 0
    %p136 = por %p134, %p135
    %s138 = sadd.s32 %s137, 1
    %p141 = scmp.eq.s32.totalorder %s14, 1
    %p142 = scmp.ne.s32.totalorder %s137, %s139
    %p143 = scmp.eq.s32.totalorder %s14, 0
    %p144 = por %p142, %p143
    %p145 = scmp.ne.s32.totalorder %s137, %s139
    %p146 = scmp.eq.s32.totalorder %s19, 1
    %p147 = por %p145, %p146
    %p148 = scmp.ne.s32.totalorder %s139, %s140
    %p149 = scmp.eq.s32.totalorder %s19, 0
    %p150 = por %p148, %p149
    %p151 = scmp.ne.s32.totalorder %s139, %s140
    %p152 = scmp.eq.s32.totalorder %s20, 1
    %p153 = por %p151, %p152
    %p155 = scmp.ne.s32.totalorder %s140, %s154
    %p156 = scmp.eq.s32.totalorder %s20, 0
    %p157 = por %p155, %p156
    %s159 = sadd.s32 %s158, 1
    %p162 = scmp.eq.s32.totalorder %s14, 1
    %p163 = scmp.ne.s32.totalorder %s158, %s160
    %p164 = scmp.eq.s32.totalorder %s14, 0
    %p165 = por %p163, %p164
    %p166 = scmp.ne.s32.totalorder %s158, %s160
    %p167 = scmp.eq.s32.totalorder %s19, 1
    %p168 = por %p166, %p167
    %p169 = scmp.ne.s32.totalorder %s160, %s161
    %p170 = scmp.eq.s32.totalorder %s19, 0
    %p171 = por %p169, %p170
    %p172 = scmp.ne.s32.totalorder %s160, %s161
    %p173 = scmp.eq.s32.totalorder %s20, 1
    %p174 = por %p172, %p173
    %p176 = scmp.ne.s32.totalorder %s161, %s175
    %p177 = scmp.eq.s32.totalorder %s20, 0
    %p178 = por %p176, %p177
    %s180 = sadd.s32 %s179, 1
    %p183 = scmp.eq.s32.totalorder %s14, 1
    %p184 = scmp.ne.s32.totalorder %s179, %s181
    %p185 = scmp.eq.s32.totalorder %s14, 0
    %p186 = por %p184, %p185
    %p187 = scmp.ne.s32.totalorder %s179, %s181
    %p188 = scmp.eq.s32.totalorder %s19, 1
    %p189 = por %p187, %p188
    %p190 = scmp.ne.s32.totalorder %s181, %s182
    %p191 = scmp.eq.s32.totalorder %s19, 0
    %p192 = por %p190, %p191
    %p193 = scmp.ne.s32.totalorder %s181, %s182
    %p194 = scmp.eq.s32.totalorder %s20, 1
    %p195 = por %p193, %p194
    %p197 = scmp.ne.s32.totalorder %s182, %s196
    %p198 = scmp.eq.s32.totalorder %s20, 0
    %p199 = por %p197, %p198
    %s200 = ssub.s32 %s14, %s21
    %p201 = scmp.eq.s32.totalorder %s200, 0
    %s203 = sadd.s32 %s202, 1
    %s204 = scalar_select %p201, %s202, %s203
    %p207 = pneg %p201
    %p208 = scmp.eq.s32.totalorder %s14, 1
    %p209 = por %p207, %p208
    %p210 = scmp.ne.s32.totalorder %s202, %s205
    %p211 = scmp.eq.s32.totalorder %s14, 0
    %p212 = por %p210, %p211
    %p213 = scmp.ne.s32.totalorder %s202, %s205
    %p214 = scmp.eq.s32.totalorder %s19, 1
    %p215 = por %p213, %p214
    %p216 = scmp.ne.s32.totalorder %s205, %s206
    %p217 = scmp.eq.s32.totalorder %s19, 0
    %p218 = por %p216, %p217
    %p219 = scmp.ne.s32.totalorder %s205, %s206
    %p220 = scmp.eq.s32.totalorder %s20, 1
    %p221 = por %p219, %p220
    %p223 = scmp.ne.s32.totalorder %s206, %s222
    %p224 = scmp.eq.s32.totalorder %s20, 0
    %p225 = por %p223, %p224
    %p226 = scmp.le.s32.totalorder 1, %s14
    %p227 = scmp.lt.s32.totalorder %s14, 3
    %p228 = pnand %p226, %p227
    %p229 = pneg %p228
    // Predicated region
    $region9: #{tpu_custom_call.1} parent=5 // pred_check
      _
    $region10: #{tpu_custom_call.1} parent=5 // pred_check_branch
      %231 = sbr.rel (%p228) target = $region12
    $region11: #{tpu_custom_call.1} parent=5 // pred_region
      %s232 = ssub.s32 %s14, 1
      // Predicated region
      $region13: #{tpu_custom_call.1} parent=11 // pred_check
        %p233 = pneg %p87
      $region14: #{tpu_custom_call.1} parent=11 // pred_check_branch
        %235 = sbr.rel (%p233) target = $region16
      $region15: #{tpu_custom_call.1} parent=11 // pred_region
        _
      $region16: #{tpu_custom_call.1} parent=11 // pred_fallthru
        _
      // Predicated region
      $region17: #{tpu_custom_call.1} parent=11 // pred_check
        %p236 = pneg %p108
      $region18: #{tpu_custom_call.1} parent=11 // pred_check_branch
        %238 = sbr.rel (%p236) target = $region20
      $region19: #{tpu_custom_call.1} parent=11 // pred_region
        _
      $region20: #{tpu_custom_call.1} parent=11 // pred_fallthru
        _
      // Predicated region
      $region21: #{tpu_custom_call.1} parent=11 // pred_check
        %p239 = pneg %p129
      $region22: #{tpu_custom_call.1} parent=11 // pred_check_branch
        %241 = sbr.rel (%p239) target = $region24
      $region23: #{tpu_custom_call.1} parent=11 // pred_region
        _
      $region24: #{tpu_custom_call.1} parent=11 // pred_fallthru
        _
      // Predicated region
      $region25: #{tpu_custom_call.1} parent=11 // pred_check
        %p242 = pneg %p150
      $region26: #{tpu_custom_call.1} parent=11 // pred_check_branch
        %244 = sbr.rel (%p242) target = $region28
      $region27: #{tpu_custom_call.1} parent=11 // pred_region
        _
      $region28: #{tpu_custom_call.1} parent=11 // pred_fallthru
        _
      // Predicated region
      $region29: #{tpu_custom_call.1} parent=11 // pred_check
        %p245 = pneg %p171
      $region30: #{tpu_custom_call.1} parent=11 // pred_check_branch
        %247 = sbr.rel (%p245) target = $region32
      $region31: #{tpu_custom_call.1} parent=11 // pred_region
        _
      $region32: #{tpu_custom_call.1} parent=11 // pred_fallthru
        _
      // Predicated region
      $region33: #{tpu_custom_call.1} parent=11 // pred_check
        %p248 = pneg %p192
      $region34: #{tpu_custom_call.1} parent=11 // pred_check_branch
        %250 = sbr.rel (%p248) target = $region36
      $region35: #{tpu_custom_call.1} parent=11 // pred_region
        _
      $region36: #{tpu_custom_call.1} parent=11 // pred_fallthru
        _
    $region12: #{tpu_custom_call.1} parent=5 // pred_fallthru
      _
    %p251 = scmp.lt.s32.totalorder %s14, 2
    // Predicated region
    $region37: #{tpu_custom_call.1} parent=5 // pred_check
      %p252 = pneg %p251
    $region38: #{tpu_custom_call.1} parent=5 // pred_check_branch
      %254 = sbr.rel (%p252) target = $region40
    $region39: #{tpu_custom_call.1} parent=5 // pred_region
      // Predicated region
      $region41: #{tpu_custom_call.1} parent=39 // pred_check
        %p255 = pneg %p34
      $region42: #{tpu_custom_call.1} parent=39 // pred_check_branch
        %257 = sbr.rel (%p255) target = $region44
      $region43: #{tpu_custom_call.1} parent=39 // pred_region
        %p258 = scmp.lt.s32.totalorder %s14, 1
        %s259 = scalar_select %p258, %s14, 1
        %s260 = smul.addr %s259, 6
        %s261 = smul.addr %s260, 4
        %s262 = scalar_lea.vmem %s0, %s261
      $region44: #{tpu_custom_call.1} parent=39 // pred_fallthru
        _
      // Predicated region
      $region45: #{tpu_custom_call.1} parent=39 // pred_check
        %p263 = pneg %p60
      $region46: #{tpu_custom_call.1} parent=39 // pred_check_branch
        %265 = sbr.rel (%p263) target = $region48
      $region47: #{tpu_custom_call.1} parent=39 // pred_region
        %p266 = scmp.lt.s32.totalorder %s14, 1
        %s267 = scalar_select %p266, %s14, 1
        %s268 = smul.addr %s267, 24
        %s269 = smul.addr %s268, 8
        %s270 = scalar_lea.vmem %s1, %s269
      $region48: #{tpu_custom_call.1} parent=39 // pred_fallthru
        _
    $region40: #{tpu_custom_call.1} parent=5 // pred_fallthru
      _
    %p271 = scmp.le.s32.totalorder 1, %s14
    %p272 = scmp.lt.s32.totalorder %s14, 3
    %p273 = pnand %p271, %p272
    %p274 = pneg %p273
    // Predicated region
    $region49: #{tpu_custom_call.1} parent=5 // pred_check
      _
    $region50: #{tpu_custom_call.1} parent=5 // pred_check_branch
      %276 = sbr.rel (%p273) target = $region52
    $region51: #{tpu_custom_call.1} parent=5 // pred_region
      %s277 = ssub.s32 %s14, 1
      %p278 = scmp.lt.s32.totalorder %s19, 1
      %s279 = scalar_select %p278, %s19, 1
      %s280 = smul.addr %s279, 6
      %s281 = smul.addr %s280, 4
      %s282 = scalar_lea.vmem %s0, %s281
      %p283 = pneg %p40
      %p284 = pneg %p37
      %p285 = scmp.lt.s32.totalorder %s19, 1
      %s286 = scalar_select %p285, %s19, 1
      %s287 = smul.addr %s286, 24
      %s288 = smul.addr %s287, 8
      %s289 = scalar_lea.vmem %s1, %s288
      %p290 = pneg %p66
      %p291 = pneg %p63
      %p292 = pneg %p87
      %p293 = pneg %p84
      %p294 = pneg %p108
      %p295 = pneg %p105
      %p296 = pneg %p129
      %p297 = pneg %p126
      %p298 = pneg %p150
      %p299 = pneg %p147
      %p300 = pneg %p171
      %p301 = pneg %p168
      %p302 = pneg %p192
      %p303 = pneg %p189
      %p304 = pneg %p218
      %p305 = pneg %p215
      %p306 = scmp.lt.s32.totalorder %s19, 1
      %s307 = scalar_select %p306, %s19, 1
      %s308 = smul.addr %s307, 16
      %s309 = smul.addr %s308, 8
      %s310 = scalar_lea.vmem %s8, %s309
      %p311 = scmp.lt.s32.totalorder %s19, 1
      %s312 = scalar_select %p311, %s19, 1
      %s313 = smul.addr %s312, 6
      %s314 = smul.addr %s313, 4
      %s315 = scalar_lea.vmem %s0, %s314
      %p316 = scmp.lt.s32.totalorder %s19, 1
      %s317 = scalar_select %p316, %s19, 1
      %s318 = smul.addr %s317, 24
      %s319 = smul.addr %s318, 8
      %s320 = scalar_lea.vmem %s1, %s319
      %p321 = scmp.lt.s32.totalorder %s19, 1
      %s322 = scalar_select %p321, %s19, 1
      %s323 = smul.addr %s322, 16
      %s324 = smul.addr %s323, 8
      %s325 = scalar_lea.vmem %s8, %s324
      %v326 = vld [vmem:[%s315] sm:$0xff]
      %v327 = vld [vmem:[%s315 + $0x8] sm:$0xff]
      %v328 = vld [vmem:[%s315 + $0x10] sm:$0xff]
      %332 = vst [vmem:[#allocation1] ss:$2 sm:$0xff] %v326
      %s333 = scalar_lea.vmem [#allocation1], 16
      %334 = vst [vmem:[%s333] ss:$2 sm:$0xff] %v327
      %s335 = scalar_lea.vmem [#allocation1], 32
      %336 = vst [vmem:[%s335] ss:$2 sm:$0xff] %v328
      %v337 = vld.sshfl [vmem:[#allocation1] sm:$0xff pattern:$0x75316420]
      %v338 = vld.sshfl [vmem:[#allocation1 + $0x8] sm:$0xff pattern:$0x75316420]
      %v339 = vld.sshfl [vmem:[#allocation1 + $0x10] sm:$0xff pattern:$0x75316420]
      %v340 = vld.sshfl [vmem:[#allocation1 + $0x18] sm:$0xff pattern:$0x75316420]
      %v341 = vld.sshfl [vmem:[#allocation1 + $0x20] sm:$0xff pattern:$0x75316420]
      %v342 = vld.sshfl [vmem:[#allocation1 + $0x28] sm:$0xff pattern:$0x75316420]
      %v349 = vpack.c.bf16 %v337, %v337
      %v350 = vpack.c.bf16 %v338, %v338
      %v351 = vpack.c.bf16 %v339, %v339
      %v352 = vpack.c.bf16 %v340, %v340
      %v353 = vpack.c.bf16 %v341, %v341
      %v354 = vpack.c.bf16 %v342, %v342
      %v355 = vld [vmem:[%s2] sm:$0xf]
      %v356 = vld [vmem:[%s2 + $0x4] sm:$0xf]
      %v357 = vld [vmem:[%s2 + $0x8] sm:$0xf]
      %v358 = vld [vmem:[%s2 + $0xc] sm:$0xf]
      %v359 = vld [vmem:[%s2 + $0x10] sm:$0xf]
      %v360 = vld [vmem:[%s2 + $0x14] sm:$0xf]
      %v361 = vld [vmem:[%s2 + $0x18] sm:$0xf]
      %v362 = vld [vmem:[%s2 + $0x1c] sm:$0xf]
      %v363 = vld [vmem:[%s2 + $0x20] sm:$0xf]
      %v364 = vld [vmem:[%s2 + $0x24] sm:$0xf]
      %v365 = vld [vmem:[%s2 + $0x28] sm:$0xf]
      %v366 = vld [vmem:[%s2 + $0x2c] sm:$0xf]
      %v367 = vld [vmem:[%s2 + $0x30] sm:$0xf]
      %v368 = vld [vmem:[%s2 + $0x34] sm:$0xf]
      %v369 = vld [vmem:[%s2 + $0x38] sm:$0xf]
      %v370 = vld [vmem:[%s2 + $0x3c] sm:$0xf]
      %v371 = vld [vmem:[%s2 + $0x40] sm:$0xf]
      %v372 = vld [vmem:[%s2 + $0x44] sm:$0xf]
      %v373 = vld [vmem:[%s2 + $0x48] sm:$0xf]
      %v374 = vld [vmem:[%s2 + $0x4c] sm:$0xf]
      %v375 = vld [vmem:[%s2 + $0x50] sm:$0xf]
      %v376 = vld [vmem:[%s2 + $0x54] sm:$0xf]
      %v377 = vld [vmem:[%s2 + $0x58] sm:$0xf]
      %v378 = vld [vmem:[%s2 + $0x5c] sm:$0xf]
      %v379 = vld [vmem:[%s2 + $0x60] sm:$0xf]
      %v380 = vld [vmem:[%s2 + $0x64] sm:$0xf]
      %v381 = vld [vmem:[%s2 + $0x68] sm:$0xf]
      %v382 = vld [vmem:[%s2 + $0x6c] sm:$0xf]
      %v383 = vld [vmem:[%s2 + $0x70] sm:$0xf]
      %v384 = vld [vmem:[%s2 + $0x74] sm:$0xf]
      %v385 = vld [vmem:[%s2 + $0x78] sm:$0xf]
      %v386 = vld [vmem:[%s2 + $0x7c] sm:$0xf]
      %v387 = vld [vmem:[%s2 + $0x80] sm:$0xf]
      %v388 = vld [vmem:[%s2 + $0x84] sm:$0xf]
      %v389 = vld [vmem:[%s2 + $0x88] sm:$0xf]
      %v390 = vld [vmem:[%s2 + $0x8c] sm:$0xf]
      %v391 = vld [vmem:[%s2 + $0x90] sm:$0xf]
      %v392 = vld [vmem:[%s2 + $0x94] sm:$0xf]
      %v393 = vld [vmem:[%s2 + $0x98] sm:$0xf]
      %v394 = vld [vmem:[%s2 + $0x9c] sm:$0xf]
      %v395 = vld [vmem:[%s2 + $0xa0] sm:$0xf]
      %v396 = vld [vmem:[%s2 + $0xa4] sm:$0xf]
      %v397 = vld [vmem:[%s2 + $0xa8] sm:$0xf]
      %v398 = vld [vmem:[%s2 + $0xac] sm:$0xf]
      %v399 = vld [vmem:[%s2 + $0xb0] sm:$0xf]
      %v400 = vld [vmem:[%s2 + $0xb4] sm:$0xf]
      %v401 = vld [vmem:[%s2 + $0xb8] sm:$0xf]
      %v402 = vld [vmem:[%s2 + $0xbc] sm:$0xf]
      %v403 = vld [vmem:[%s2 + $0xc0] sm:$0xf]
      %v404 = vld [vmem:[%s2 + $0xc4] sm:$0xf]
      %v405 = vld [vmem:[%s2 + $0xc8] sm:$0xf]
      %v406 = vld [vmem:[%s2 + $0xcc] sm:$0xf]
      %v407 = vld [vmem:[%s2 + $0xd0] sm:$0xf]
      %v408 = vld [vmem:[%s2 + $0xd4] sm:$0xf]
      %v409 = vld [vmem:[%s2 + $0xd8] sm:$0xf]
      %v410 = vld [vmem:[%s2 + $0xdc] sm:$0xf]
      %v411 = vld [vmem:[%s2 + $0xe0] sm:$0xf]
      %v412 = vld [vmem:[%s2 + $0xe4] sm:$0xf]
      %v413 = vld [vmem:[%s2 + $0xe8] sm:$0xf]
      %v414 = vld [vmem:[%s2 + $0xec] sm:$0xf]
      %v415 = vld [vmem:[%s2 + $0xf0] sm:$0xf]
      %v416 = vld [vmem:[%s2 + $0xf4] sm:$0xf]
      %v417 = vld [vmem:[%s2 + $0xf8] sm:$0xf]
      %v418 = vld [vmem:[%s2 + $0xfc] sm:$0xf]
      %v419 = vld [vmem:[%s2 + $0x100] sm:$0xf]
      %v420 = vld [vmem:[%s2 + $0x104] sm:$0xf]
      %v421 = vld [vmem:[%s2 + $0x108] sm:$0xf]
      %v422 = vld [vmem:[%s2 + $0x10c] sm:$0xf]
      %v423 = vld [vmem:[%s2 + $0x110] sm:$0xf]
      %v424 = vld [vmem:[%s2 + $0x114] sm:$0xf]
      %v425 = vld [vmem:[%s2 + $0x118] sm:$0xf]
      %v426 = vld [vmem:[%s2 + $0x11c] sm:$0xf]
      %v427 = vld [vmem:[%s2 + $0x120] sm:$0xf]
      %v428 = vld [vmem:[%s2 + $0x124] sm:$0xf]
      %v429 = vld [vmem:[%s2 + $0x128] sm:$0xf]
      %v430 = vld [vmem:[%s2 + $0x12c] sm:$0xf]
      %v431 = vld [vmem:[%s2 + $0x130] sm:$0xf]
      %v432 = vld [vmem:[%s2 + $0x134] sm:$0xf]
      %v433 = vld [vmem:[%s2 + $0x138] sm:$0xf]
      %v434 = vld [vmem:[%s2 + $0x13c] sm:$0xf]
      %v435 = vld [vmem:[%s2 + $0x140] sm:$0xf]
      %v436 = vld [vmem:[%s2 + $0x144] sm:$0xf]
      %v437 = vld [vmem:[%s2 + $0x148] sm:$0xf]
      %v438 = vld [vmem:[%s2 + $0x14c] sm:$0xf]
      %v439 = vld [vmem:[%s2 + $0x150] sm:$0xf]
      %v440 = vld [vmem:[%s2 + $0x154] sm:$0xf]
      %v441 = vld [vmem:[%s2 + $0x158] sm:$0xf]
      %v442 = vld [vmem:[%s2 + $0x15c] sm:$0xf]
      %v443 = vld [vmem:[%s2 + $0x160] sm:$0xf]
      %v444 = vld [vmem:[%s2 + $0x164] sm:$0xf]
      %v445 = vld [vmem:[%s2 + $0x168] sm:$0xf]
      %v446 = vld [vmem:[%s2 + $0x16c] sm:$0xf]
      %v447 = vld [vmem:[%s2 + $0x170] sm:$0xf]
      %v448 = vld [vmem:[%s2 + $0x174] sm:$0xf]
      %v449 = vld [vmem:[%s2 + $0x178] sm:$0xf]
      %v450 = vld [vmem:[%s2 + $0x17c] sm:$0xf]
      %v451 = vld [vmem:[%s3] sm:$0x1]
      %v453 = vperm.slane %v451, 0
      %v551 = vunpack.c.l.b16 %v355
      %v552 = vunpack.c.l.b16 %v356
      %v553 = vunpack.c.l.b16 %v357
      %v554 = vunpack.c.l.b16 %v358
      %v555 = vunpack.c.l.b16 %v359
      %v556 = vunpack.c.l.b16 %v360
      %v557 = vunpack.c.l.b16 %v361
      %v558 = vunpack.c.l.b16 %v362
      %v559 = vunpack.c.l.b16 %v363
      %v560 = vunpack.c.l.b16 %v364
      %v561 = vunpack.c.l.b16 %v365
      %v562 = vunpack.c.l.b16 %v366
      %v563 = vunpack.c.l.b16 %v367
      %v564 = vunpack.c.l.b16 %v368
      %v565 = vunpack.c.l.b16 %v369
      %v566 = vunpack.c.l.b16 %v370
      %v567 = vunpack.c.l.b16 %v371
      %v568 = vunpack.c.l.b16 %v372
      %v569 = vunpack.c.l.b16 %v373
      %v570 = vunpack.c.l.b16 %v374
      %v571 = vunpack.c.l.b16 %v375
      %v572 = vunpack.c.l.b16 %v376
      %v573 = vunpack.c.l.b16 %v377
      %v574 = vunpack.c.l.b16 %v378
      %v575 = vunpack.c.l.b16 %v379
      %v576 = vunpack.c.l.b16 %v380
      %v577 = vunpack.c.l.b16 %v381
      %v578 = vunpack.c.l.b16 %v382
      %v579 = vunpack.c.l.b16 %v383
      %v580 = vunpack.c.l.b16 %v384
      %v581 = vunpack.c.l.b16 %v385
      %v582 = vunpack.c.l.b16 %v386
      %v583 = vunpack.c.l.b16 %v387
      %v584 = vunpack.c.l.b16 %v388
      %v585 = vunpack.c.l.b16 %v389
      %v586 = vunpack.c.l.b16 %v390
      %v587 = vunpack.c.l.b16 %v391
      %v588 = vunpack.c.l.b16 %v392
      %v589 = vunpack.c.l.b16 %v393
      %v590 = vunpack.c.l.b16 %v394
      %v591 = vunpack.c.l.b16 %v395
      %v592 = vunpack.c.l.b16 %v396
      %v593 = vunpack.c.l.b16 %v397
      %v594 = vunpack.c.l.b16 %v398
      %v595 = vunpack.c.l.b16 %v399
      %v596 = vunpack.c.l.b16 %v400
      %v597 = vunpack.c.l.b16 %v401
      %v598 = vunpack.c.l.b16 %v402
      %v599 = vunpack.c.l.b16 %v403
      %v600 = vunpack.c.l.b16 %v404
      %v601 = vunpack.c.l.b16 %v405
      %v602 = vunpack.c.l.b16 %v406
      %v603 = vunpack.c.l.b16 %v407
      %v604 = vunpack.c.l.b16 %v408
      %v605 = vunpack.c.l.b16 %v409
      %v606 = vunpack.c.l.b16 %v410
      %v607 = vunpack.c.l.b16 %v411
      %v608 = vunpack.c.l.b16 %v412
      %v609 = vunpack.c.l.b16 %v413
      %v610 = vunpack.c.l.b16 %v414
      %v611 = vunpack.c.l.b16 %v415
      %v612 = vunpack.c.l.b16 %v416
      %v613 = vunpack.c.l.b16 %v417
      %v614 = vunpack.c.l.b16 %v418
      %v615 = vunpack.c.l.b16 %v419
      %v616 = vunpack.c.l.b16 %v420
      %v617 = vunpack.c.l.b16 %v421
      %v618 = vunpack.c.l.b16 %v422
      %v619 = vunpack.c.l.b16 %v423
      %v620 = vunpack.c.l.b16 %v424
      %v621 = vunpack.c.l.b16 %v425
      %v622 = vunpack.c.l.b16 %v426
      %v623 = vunpack.c.l.b16 %v427
      %v624 = vunpack.c.l.b16 %v428
      %v625 = vunpack.c.l.b16 %v429
      %v626 = vunpack.c.l.b16 %v430
      %v627 = vunpack.c.l.b16 %v431
      %v628 = vunpack.c.l.b16 %v432
      %v629 = vunpack.c.l.b16 %v433
      %v630 = vunpack.c.l.b16 %v434
      %v631 = vunpack.c.l.b16 %v435
      %v632 = vunpack.c.l.b16 %v436
      %v633 = vunpack.c.l.b16 %v437
      %v634 = vunpack.c.l.b16 %v438
      %v635 = vunpack.c.l.b16 %v439
      %v636 = vunpack.c.l.b16 %v440
      %v637 = vunpack.c.l.b16 %v441
      %v638 = vunpack.c.l.b16 %v442
      %v639 = vunpack.c.l.b16 %v443
      %v640 = vunpack.c.l.b16 %v444
      %v641 = vunpack.c.l.b16 %v445
      %v642 = vunpack.c.l.b16 %v446
      %v643 = vunpack.c.l.b16 %v447
      %v644 = vunpack.c.l.b16 %v448
      %v645 = vunpack.c.l.b16 %v449
      %v646 = vunpack.c.l.b16 %v450
      %v647 = vpack.c.b16 %v552, %v551
      %v648 = vpack.c.b16 %v554, %v553
      %v649 = vpack.c.b16 %v556, %v555
      %v650 = vpack.c.b16 %v558, %v557
      %v651 = vpack.c.b16 %v560, %v559
      %v652 = vpack.c.b16 %v562, %v561
      %v653 = vpack.c.b16 %v564, %v563
      %v654 = vpack.c.b16 %v566, %v565
      %v655 = vpack.c.b16 %v568, %v567
      %v656 = vpack.c.b16 %v570, %v569
      %v657 = vpack.c.b16 %v572, %v571
      %v658 = vpack.c.b16 %v574, %v573
      %v659 = vpack.c.b16 %v576, %v575
      %v660 = vpack.c.b16 %v578, %v577
      %v661 = vpack.c.b16 %v580, %v579
      %v662 = vpack.c.b16 %v582, %v581
      %v663 = vpack.c.b16 %v584, %v583
      %v664 = vpack.c.b16 %v586, %v585
      %v665 = vpack.c.b16 %v588, %v587
      %v666 = vpack.c.b16 %v590, %v589
      %v667 = vpack.c.b16 %v592, %v591
      %v668 = vpack.c.b16 %v594, %v593
      %v669 = vpack.c.b16 %v596, %v595
      %v670 = vpack.c.b16 %v598, %v597
      %v671 = vpack.c.b16 %v600, %v599
      %v672 = vpack.c.b16 %v602, %v601
      %v673 = vpack.c.b16 %v604, %v603
      %v674 = vpack.c.b16 %v606, %v605
      %v675 = vpack.c.b16 %v608, %v607
      %v676 = vpack.c.b16 %v610, %v609
      %v677 = vpack.c.b16 %v612, %v611
      %v678 = vpack.c.b16 %v614, %v613
      %v679 = vpack.c.b16 %v616, %v615
      %v680 = vpack.c.b16 %v618, %v617
      %v681 = vpack.c.b16 %v620, %v619
      %v682 = vpack.c.b16 %v622, %v621
      %v683 = vpack.c.b16 %v624, %v623
      %v684 = vpack.c.b16 %v626, %v625
      %v685 = vpack.c.b16 %v628, %v627
      %v686 = vpack.c.b16 %v630, %v629
      %v687 = vpack.c.b16 %v632, %v631
      %v688 = vpack.c.b16 %v634, %v633
      %v689 = vpack.c.b16 %v636, %v635
      %v690 = vpack.c.b16 %v638, %v637
      %v691 = vpack.c.b16 %v640, %v639
      %v692 = vpack.c.b16 %v642, %v641
      %v693 = vpack.c.b16 %v644, %v643
      %v694 = vpack.c.b16 %v646, %v645
      %743 = vmatpush.bf16.msra.mxu0 %v654
      %744 = vmatpush.bf16.msra.mxu0 %v653
      %745 = vmatpush.bf16.msra.mxu0 %v652
      %746 = vmatpush.bf16.msra.mxu0 %v651
      %747 = vmatpush.bf16.msra.mxu0 %v650
      %748 = vmatpush.bf16.msra.mxu0 %v649
      %749 = vmatpush.bf16.msra.mxu0 %v648
      %750 = vmatpush.bf16.msra.mxu0 %v647
      %751 = vmatmul.bf16.gmra.mxu0 %v349
      %v752 = vpop.f32.mrf.mxu0
      %v753 = vadd.f32 %v453, %v752
      %v754 = vpop.f32.mrf.mxu0
      %755 = vdwg.mxu0
      %756 = vmatpush.bf16.msra.mxu0 %v662
      %757 = vmatpush.bf16.msra.mxu0 %v661
      %758 = vmatpush.bf16.msra.mxu0 %v660
      %759 = vmatpush.bf16.msra.mxu0 %v659
      %760 = vmatpush.bf16.msra.mxu0 %v658
      %761 = vmatpush.bf16.msra.mxu0 %v657
      %762 = vmatpush.bf16.msra.mxu0 %v656
      %763 = vmatpush.bf16.msra.mxu0 %v655
      %764 = vmatmul.bf16.gmra.mxu0 %v350
      %v765 = vpop.f32.mrf.mxu0
      %v766 = vadd.f32 %v753, %v765
      %v767 = vpop.f32.mrf.mxu0
      %768 = vdwg.mxu0
      %769 = vmatpush.bf16.msra.mxu0 %v670
      %770 = vmatpush.bf16.msra.mxu0 %v669
      %771 = vmatpush.bf16.msra.mxu0 %v668
      %772 = vmatpush.bf16.msra.mxu0 %v667
      %773 = vmatpush.bf16.msra.mxu0 %v666
      %774 = vmatpush.bf16.msra.mxu0 %v665
      %775 = vmatpush.bf16.msra.mxu0 %v664
      %776 = vmatpush.bf16.msra.mxu0 %v663
      %777 = vmatmul.bf16.gmra.mxu0 %v351
      %v778 = vpop.f32.mrf.mxu0
      %v779 = vadd.f32 %v766, %v778
      %v780 = vpop.f32.mrf.mxu0
      %781 = vdwg.mxu0
      %782 = vmatpush.bf16.msra.mxu0 %v678
      %783 = vmatpush.bf16.msra.mxu0 %v677
      %784 = vmatpush.bf16.msra.mxu0 %v676
      %785 = vmatpush.bf16.msra.mxu0 %v675
      %786 = vmatpush.bf16.msra.mxu0 %v674
      %787 = vmatpush.bf16.msra.mxu0 %v673
      %788 = vmatpush.bf16.msra.mxu0 %v672
      %789 = vmatpush.bf16.msra.mxu0 %v671
      %790 = vmatmul.bf16.gmra.mxu0 %v352
      %v791 = vpop.f32.mrf.mxu0
      %v792 = vadd.f32 %v779, %v791
      %v793 = vpop.f32.mrf.mxu0
      %794 = vdwg.mxu0
      %795 = vmatpush.bf16.msra.mxu0 %v686
      %796 = vmatpush.bf16.msra.mxu0 %v685
      %797 = vmatpush.bf16.msra.mxu0 %v684
      %798 = vmatpush.bf16.msra.mxu0 %v683
      %799 = vmatpush.bf16.msra.mxu0 %v682
      %800 = vmatpush.bf16.msra.mxu0 %v681
      %801 = vmatpush.bf16.msra.mxu0 %v680
      %802 = vmatpush.bf16.msra.mxu0 %v679
      %803 = vmatmul.bf16.gmra.mxu0 %v353
      %v804 = vpop.f32.mrf.mxu0
      %v805 = vadd.f32 %v792, %v804
      %v806 = vpop.f32.mrf.mxu0
      %807 = vdwg.mxu0
      %808 = vmatpush.bf16.msra.mxu0 %v694
      %809 = vmatpush.bf16.msra.mxu0 %v693
      %810 = vmatpush.bf16.msra.mxu0 %v692
      %811 = vmatpush.bf16.msra.mxu0 %v691
      %812 = vmatpush.bf16.msra.mxu0 %v690
      %813 = vmatpush.bf16.msra.mxu0 %v689
      %814 = vmatpush.bf16.msra.mxu0 %v688
      %815 = vmatpush.bf16.msra.mxu0 %v687
      %816 = vmatmul.bf16.gmra.mxu0 %v354
      %v817 = vpop.f32.mrf.mxu0
      %v818 = vadd.f32 %v805, %v817
      %v819 = vpop.f32.mrf.mxu0
      %820 = vdwg.mxu0
      %v821 = vld [vmem:[%s6] sm:$0xf]
      %v822 = vadd.f32 %v818, %v821
      %v823 = vld [vmem:[%s320] sm:$0xff]
      %v824 = vld [vmem:[%s320 + $0x8] sm:$0xff]
      %v825 = vld [vmem:[%s320 + $0x10] sm:$0xff]
      %v826 = vld [vmem:[%s320 + $0x18] sm:$0xff]
      %v827 = vld [vmem:[%s320 + $0x20] sm:$0xff]
      %v828 = vld [vmem:[%s320 + $0x28] sm:$0xff]
      %v829 = vld [vmem:[%s320 + $0x30] sm:$0xff]
      %v830 = vld [vmem:[%s320 + $0x38] sm:$0xff]
      %v831 = vld [vmem:[%s320 + $0x40] sm:$0xff]
      %v832 = vld [vmem:[%s320 + $0x48] sm:$0xff]
      %v833 = vld [vmem:[%s320 + $0x50] sm:$0xff]
      %v834 = vld [vmem:[%s320 + $0x58] sm:$0xff]
      %v835 = vld [vmem:[%s320 + $0x60] sm:$0xff]
      %v836 = vld [vmem:[%s320 + $0x68] sm:$0xff]
      %v837 = vld [vmem:[%s320 + $0x70] sm:$0xff]
      %v838 = vld [vmem:[%s320 + $0x78] sm:$0xff]
      %v839 = vld [vmem:[%s320 + $0x80] sm:$0xff]
      %v840 = vld [vmem:[%s320 + $0x88] sm:$0xff]
      %v841 = vld [vmem:[%s320 + $0x90] sm:$0xff]
      %v842 = vld [vmem:[%s320 + $0x98] sm:$0xff]
      %v843 = vld [vmem:[%s320 + $0xa0] sm:$0xff]
      %v844 = vld [vmem:[%s320 + $0xa8] sm:$0xff]
      %v845 = vld [vmem:[%s320 + $0xb0] sm:$0xff]
      %v846 = vld [vmem:[%s320 + $0xb8] sm:$0xff]
      %v847 = vpack.c.bf16 %v825, %v823
      %v848 = vpack.c.bf16 %v826, %v824
      %v849 = vpack.c.bf16 %v829, %v827
      %v850 = vpack.c.bf16 %v830, %v828
      %v851 = vpack.c.bf16 %v833, %v831
      %v852 = vpack.c.bf16 %v834, %v832
      %v853 = vpack.c.bf16 %v837, %v835
      %v854 = vpack.c.bf16 %v838, %v836
      %v855 = vpack.c.bf16 %v841, %v839
      %v856 = vpack.c.bf16 %v842, %v840
      %v857 = vpack.c.bf16 %v845, %v843
      %v858 = vpack.c.bf16 %v846, %v844
      %v859 = vld [vmem:[%s4] sm:$0xf]
      %v860 = vld [vmem:[%s4 + $0x4] sm:$0xf]
      %v861 = vld [vmem:[%s4 + $0x8] sm:$0xf]
      %v862 = vld [vmem:[%s4 + $0xc] sm:$0xf]
      %v863 = vld [vmem:[%s4 + $0x10] sm:$0xf]
      %v864 = vld [vmem:[%s4 + $0x14] sm:$0xf]
      %v865 = vld [vmem:[%s4 + $0x18] sm:$0xf]
      %v866 = vld [vmem:[%s4 + $0x1c] sm:$0xf]
      %v867 = vld [vmem:[%s4 + $0x20] sm:$0xf]
      %v868 = vld [vmem:[%s4 + $0x24] sm:$0xf]
      %v869 = vld [vmem:[%s4 + $0x28] sm:$0xf]
      %v870 = vld [vmem:[%s4 + $0x2c] sm:$0xf]
      %v871 = vld [vmem:[%s4 + $0x30] sm:$0xf]
      %v872 = vld [vmem:[%s4 + $0x34] sm:$0xf]
      %v873 = vld [vmem:[%s4 + $0x38] sm:$0xf]
      %v874 = vld [vmem:[%s4 + $0x3c] sm:$0xf]
      %v875 = vld [vmem:[%s4 + $0x40] sm:$0xf]
      %v876 = vld [vmem:[%s4 + $0x44] sm:$0xf]
      %v877 = vld [vmem:[%s4 + $0x48] sm:$0xf]
      %v878 = vld [vmem:[%s4 + $0x4c] sm:$0xf]
      %v879 = vld [vmem:[%s4 + $0x50] sm:$0xf]
      %v880 = vld [vmem:[%s4 + $0x54] sm:$0xf]
      %v881 = vld [vmem:[%s4 + $0x58] sm:$0xf]
      %v882 = vld [vmem:[%s4 + $0x5c] sm:$0xf]
      %v883 = vld [vmem:[%s4 + $0x60] sm:$0xf]
      %v884 = vld [vmem:[%s4 + $0x64] sm:$0xf]
      %v885 = vld [vmem:[%s4 + $0x68] sm:$0xf]
      %v886 = vld [vmem:[%s4 + $0x6c] sm:$0xf]
      %v887 = vld [vmem:[%s4 + $0x70] sm:$0xf]
      %v888 = vld [vmem:[%s4 + $0x74] sm:$0xf]
      %v889 = vld [vmem:[%s4 + $0x78] sm:$0xf]
      %v890 = vld [vmem:[%s4 + $0x7c] sm:$0xf]
      %v891 = vld [vmem:[%s5] sm:$0x1]
      %v893 = vperm.slane %v891, 0
      %v927 = vunpack.c.l.b16 %v859
      %v928 = vunpack.c.l.b16 %v860
      %v929 = vunpack.c.l.b16 %v861
      %v930 = vunpack.c.l.b16 %v862
      %v931 = vunpack.c.l.b16 %v863
      %v932 = vunpack.c.l.b16 %v864
      %v933 = vunpack.c.l.b16 %v865
      %v934 = vunpack.c.l.b16 %v866
      %v935 = vunpack.c.l.b16 %v867
      %v936 = vunpack.c.l.b16 %v868
      %v937 = vunpack.c.l.b16 %v869
      %v938 = vunpack.c.l.b16 %v870
      %v939 = vunpack.c.l.b16 %v871
      %v940 = vunpack.c.l.b16 %v872
      %v941 = vunpack.c.l.b16 %v873
      %v942 = vunpack.c.l.b16 %v874
      %v943 = vunpack.c.l.b16 %v875
      %v944 = vunpack.c.l.b16 %v876
      %v945 = vunpack.c.l.b16 %v877
      %v946 = vunpack.c.l.b16 %v878
      %v947 = vunpack.c.l.b16 %v879
      %v948 = vunpack.c.l.b16 %v880
      %v949 = vunpack.c.l.b16 %v881
      %v950 = vunpack.c.l.b16 %v882
      %v951 = vunpack.c.l.b16 %v883
      %v952 = vunpack.c.l.b16 %v884
      %v953 = vunpack.c.l.b16 %v885
      %v954 = vunpack.c.l.b16 %v886
      %v955 = vunpack.c.l.b16 %v887
      %v956 = vunpack.c.l.b16 %v888
      %v957 = vunpack.c.l.b16 %v889
      %v958 = vunpack.c.l.b16 %v890
      %v959 = vpack.c.b16 %v928, %v927
      %v960 = vpack.c.b16 %v930, %v929
      %v961 = vpack.c.b16 %v932, %v931
      %v962 = vpack.c.b16 %v934, %v933
      %v963 = vpack.c.b16 %v936, %v935
      %v964 = vpack.c.b16 %v938, %v937
      %v965 = vpack.c.b16 %v940, %v939
      %v966 = vpack.c.b16 %v942, %v941
      %v967 = vpack.c.b16 %v944, %v943
      %v968 = vpack.c.b16 %v946, %v945
      %v969 = vpack.c.b16 %v948, %v947
      %v970 = vpack.c.b16 %v950, %v949
      %v971 = vpack.c.b16 %v952, %v951
      %v972 = vpack.c.b16 %v954, %v953
      %v973 = vpack.c.b16 %v956, %v955
      %v974 = vpack.c.b16 %v958, %v957
      %991 = vmatpush.bf16.msra.mxu0 %v966
      %992 = vmatpush.bf16.msra.mxu0 %v965
      %993 = vmatpush.bf16.msra.mxu0 %v964
      %994 = vmatpush.bf16.msra.mxu0 %v963
      %995 = vmatpush.bf16.msra.mxu0 %v962
      %996 = vmatpush.bf16.msra.mxu0 %v961
      %997 = vmatpush.bf16.msra.mxu0 %v960
      %998 = vmatpush.bf16.msra.mxu0 %v959
      %999 = vmatmul.bf16.gmra.mxu0 %v847
      %v1000 = vpop.f32.mrf.mxu0
      %v1001 = vadd.f32 %v893, %v1000
      %v1002 = vpop.f32.mrf.mxu0
      %v1003 = vadd.f32 %v893, %v1002
      %1004 = vmatmul.bf16.gmra.mxu0 %v849
      %v1005 = vpop.f32.mrf.mxu0
      %v1006 = vadd.f32 %v893, %v1005
      %v1007 = vpop.f32.mrf.mxu0
      %v1008 = vadd.f32 %v893, %v1007
      %1009 = vmatmul.bf16.gmra.mxu0 %v851
      %v1010 = vpop.f32.mrf.mxu0
      %v1011 = vadd.f32 %v893, %v1010
      %v1012 = vpop.f32.mrf.mxu0
      %v1013 = vadd.f32 %v893, %v1012
      %1014 = vmatmul.bf16.gmra.mxu0 %v853
      %v1015 = vpop.f32.mrf.mxu0
      %v1016 = vadd.f32 %v893, %v1015
      %v1017 = vpop.f32.mrf.mxu0
      %v1018 = vadd.f32 %v893, %v1017
      %1019 = vmatmul.bf16.gmra.mxu0 %v855
      %v1020 = vpop.f32.mrf.mxu0
      %v1021 = vadd.f32 %v893, %v1020
      %v1022 = vpop.f32.mrf.mxu0
      %v1023 = vadd.f32 %v893, %v1022
      %1024 = vmatmul.bf16.gmra.mxu0 %v857
      %v1025 = vpop.f32.mrf.mxu0
      %v1026 = vadd.f32 %v893, %v1025
      %v1027 = vpop.f32.mrf.mxu0
      %v1028 = vadd.f32 %v893, %v1027
      %1029 = vdwg.mxu0
      %1030 = vmatpush.bf16.msra.mxu0 %v974
      %1031 = vmatpush.bf16.msra.mxu0 %v973
      %1032 = vmatpush.bf16.msra.mxu0 %v972
      %1033 = vmatpush.bf16.msra.mxu0 %v971
      %1034 = vmatpush.bf16.msra.mxu0 %v970
      %1035 = vmatpush.bf16.msra.mxu0 %v969
      %1036 = vmatpush.bf16.msra.mxu0 %v968
      %1037 = vmatpush.bf16.msra.mxu0 %v967
      %1038 = vmatmul.bf16.gmra.mxu0 %v848
      %v1039 = vpop.f32.mrf.mxu0
      %v1040 = vadd.f32 %v1001, %v1039
      %v1041 = vpop.f32.mrf.mxu0
      %v1042 = vadd.f32 %v1003, %v1041
      %1043 = vmatmul.bf16.gmra.mxu0 %v850
      %v1044 = vpop.f32.mrf.mxu0
      %v1045 = vadd.f32 %v1006, %v1044
      %v1046 = vpop.f32.mrf.mxu0
      %v1047 = vadd.f32 %v1008, %v1046
      %1048 = vmatmul.bf16.gmra.mxu0 %v852
      %v1049 = vpop.f32.mrf.mxu0
      %v1050 = vadd.f32 %v1011, %v1049
      %v1051 = vpop.f32.mrf.mxu0
      %v1052 = vadd.f32 %v1013, %v1051
      %1053 = vmatmul.bf16.gmra.mxu0 %v854
      %v1054 = vpop.f32.mrf.mxu0
      %v1055 = vadd.f32 %v1016, %v1054
      %v1056 = vpop.f32.mrf.mxu0
      %v1057 = vadd.f32 %v1018, %v1056
      %1058 = vmatmul.bf16.gmra.mxu0 %v856
      %v1059 = vpop.f32.mrf.mxu0
      %v1060 = vadd.f32 %v1021, %v1059
      %v1061 = vpop.f32.mrf.mxu0
      %v1062 = vadd.f32 %v1023, %v1061
      %1063 = vmatmul.bf16.gmra.mxu0 %v858
      %v1064 = vpop.f32.mrf.mxu0
      %v1065 = vadd.f32 %v1026, %v1064
      %v1066 = vpop.f32.mrf.mxu0
      %v1067 = vadd.f32 %v1028, %v1066
      %1068 = vdwg.mxu0
      %v1069 = vld [vmem:[%s7] sm:$0xff]
      %v1070 = vld [vmem:[%s7 + $0x8] sm:$0xff]
      %v1071 = vld [vmem:[%s7 + $0x10] sm:$0xff]
      %v1072 = vld [vmem:[%s7 + $0x18] sm:$0xff]
      %v1073 = vld [vmem:[%s7 + $0x20] sm:$0xff]
      %v1074 = vld [vmem:[%s7 + $0x28] sm:$0xff]
      %v1075 = vld [vmem:[%s7 + $0x30] sm:$0xff]
      %v1076 = vld [vmem:[%s7 + $0x38] sm:$0xff]
      %v1077 = vld [vmem:[%s7 + $0x40] sm:$0xff]
      %v1078 = vld [vmem:[%s7 + $0x48] sm:$0xff]
      %v1079 = vld [vmem:[%s7 + $0x50] sm:$0xff]
      %v1080 = vld [vmem:[%s7 + $0x58] sm:$0xff]
      %v1081 = vadd.f32 %v1040, %v1069
      %v1082 = vadd.f32 %v1042, %v1070
      %v1083 = vadd.f32 %v1045, %v1071
      %v1084 = vadd.f32 %v1047, %v1072
      %v1085 = vadd.f32 %v1050, %v1073
      %v1086 = vadd.f32 %v1052, %v1074
      %v1087 = vadd.f32 %v1055, %v1075
      %v1088 = vadd.f32 %v1057, %v1076
      %v1089 = vadd.f32 %v1060, %v1077
      %v1090 = vadd.f32 %v1062, %v1078
      %v1091 = vadd.f32 %v1065, %v1079
      %v1092 = vadd.f32 %v1067, %v1080
      %vm1093 = vcmask 519168
      %1094 = vst.msk [vmem:[%s325] sm:$0xf] %vm1093, %v822
      %vm1095 = vcmask 523264
      %1096 = vst.msk [vmem:[%s325 + $0x4] sm:$0xff] %vm1095, %v1081
      %1097 = vst.msk [vmem:[%s325 + $0xc] sm:$0xff] %vm1095, %v1082
      %1098 = vst.msk [vmem:[%s325 + $0x14] sm:$0xff] %vm1095, %v1083
      %1099 = vst.msk [vmem:[%s325 + $0x1c] sm:$0xff] %vm1095, %v1084
      %1100 = vst.msk [vmem:[%s325 + $0x24] sm:$0xff] %vm1095, %v1085
      %1101 = vst.msk [vmem:[%s325 + $0x2c] sm:$0xff] %vm1095, %v1086
      %1102 = vst.msk [vmem:[%s325 + $0x34] sm:$0xff] %vm1095, %v1087
      %1103 = vst.msk [vmem:[%s325 + $0x3c] sm:$0xff] %vm1095, %v1088
      %1104 = vst.msk [vmem:[%s325 + $0x44] sm:$0xff] %vm1095, %v1089
      %1105 = vst.msk [vmem:[%s325 + $0x4c] sm:$0xff] %vm1095, %v1090
      %1106 = vst.msk [vmem:[%s325 + $0x54] sm:$0xff] %vm1095, %v1091
      %1107 = vst.msk [vmem:[%s325 + $0x5c] sm:$0xff] %vm1095, %v1092
      %1108 = vst.msk [vmem:[%s325 + $0x64] sm:$0xff] %vm1095, 0.0
      %1109 = vst.msk [vmem:[%s325 + $0x6c] sm:$0xff] %vm1095, 0.0
      %1110 = vst.msk [vmem:[%s325 + $0x74] sm:$0xff] %vm1095, 0.0
      %1111 = vst.msk [vmem:[%s325 + $0x7c] sm:$0xf] %vm1093, 0.0
      %p1112 = scmp.lt.s32.totalorder %s19, 1
      %s1113 = scalar_select %p1112, %s19, 1
      %s1114 = smul.addr %s1113, 16
      %s1115 = smul.addr %s1114, 8
      %s1116 = scalar_lea.vmem %s8, %s1115
      // Predicated region
      $region53: #{tpu_custom_call.1} parent=51 // pred_check
        %p1117 = pneg %p215
      $region54: #{tpu_custom_call.1} parent=51 // pred_check_branch
        %1119 = sbr.rel (%p1117) target = $region56
      $region55: #{tpu_custom_call.1} parent=51 // pred_region
        _
      $region56: #{tpu_custom_call.1} parent=51 // pred_fallthru
        _
    $region52: #{tpu_custom_call.1} parent=5 // pred_fallthru
      _
    %p1120 = scmp.le.s32.totalorder 2, %s14
    // Predicated region
    $region57: #{tpu_custom_call.1} parent=5 // pred_check
      %p1121 = pneg %p1120
    $region58: #{tpu_custom_call.1} parent=5 // pred_check_branch
      %1123 = sbr.rel (%p1121) target = $region60
    $region59: #{tpu_custom_call.1} parent=5 // pred_region
      %s1124 = ssub.s32 %s14, 2
      // Predicated region
      $region61: #{tpu_custom_call.1} parent=59 // pred_check
        %p1125 = pneg %p221
      $region62: #{tpu_custom_call.1} parent=59 // pred_check_branch
        %1127 = sbr.rel (%p1125) target = $region64
      $region63: #{tpu_custom_call.1} parent=59 // pred_region
        %p1128 = scmp.lt.s32.totalorder %s20, 1
        %s1129 = scalar_select %p1128, %s20, 1
        %s1130 = smul.addr %s1129, 16
        %s1131 = smul.addr %s1130, 8
        %s1132 = scalar_lea.vmem %s8, %s1131
      $region64: #{tpu_custom_call.1} parent=59 // pred_fallthru
        _
    $region60: #{tpu_custom_call.1} parent=5 // pred_fallthru
      _
  $region6: #{tpu_custom_call.1} parent=0 // loop_footer
    %s18 = sadd.s32 1, %s14
  $region7: #{tpu_custom_call.1} parent=0 // loop_footer_branch
    %13 = sbr.rel target = $region3
  $region8: #{tpu_custom_call.1} parent=0 // loop_exit
    _

</llo_original>
